<compile_context>
chip_gen: v6e
topology: v6e:2x2x1
jax: 0.10.0
libtpu: 0.0.40
codegen_flags: <defaults>
</compile_context>

<pallas_src>
import numpy as np
import jax
import jax.numpy as jnp
from jax.experimental import pallas as pl
from jax.experimental.pallas import tpu as pltpu


def _round_up(a, m):
    return ((a + m - 1) // m) * m


# ---------------------------------------------------------------------------
# Pallas kernel
# ---------------------------------------------------------------------------
def _cif_band_matmul_kernel(kmin_g_ref, kmax_g_ref, kmin_c_ref, kmax_c_ref,
                            sc_ref, x_ref, out_ref, acc_ref):
    # sc_ref : (1, 8, TK)  rows: 0 = seg (f32), 1 = w_main, 2 = w_left, rest pad
    # x_ref  : (1, TK, Dp)    out_ref : (1, TJ, Dp)    acc_ref : (TJ, Dp) f32
    b = pl.program_id(0)
    jt = pl.program_id(1)
    k = pl.program_id(2)
    nk = pl.num_programs(2)

    @pl.when(k == 0)
    def _():
        acc_ref[...] = jnp.zeros_like(acc_ref)

    in_band = jnp.logical_and(k >= kmin_g_ref[b, jt], k <= kmax_g_ref[b, jt])

    @pl.when(in_band)
    def _():
        s = sc_ref[0]                        # (8, TK) f32
        seg = s[0:1, :].astype(jnp.int32)    # (1, TK) fired-output index of frame
        wm = s[1:2, :]                       # (1, TK) weight into segment seg
        wl = s[2:3, :]                       # (1, TK) leftover weight into seg + 1
        tj = acc_ref.shape[0]
        tk = s.shape[1]
        # Global output-row index of each row of this tile.
        j_idx = jax.lax.broadcasted_iota(jnp.int32, (tj, tk), 0) + jt * tj
        # W[j, t]: contribution of frame t to fired output j (scatter via compares).
        w = jnp.where(seg == j_idx, wm, 0.0) + jnp.where(seg + 1 == j_idx, wl, 0.0)
        acc_ref[...] += jnp.dot(w.astype(x_ref.dtype), x_ref[0],
                                preferred_element_type=jnp.float32)

    @pl.when(k == nk - 1)
    def _():
        out_ref[0] = acc_ref[...].astype(out_ref.dtype)


def _cif_pallas(seg_cur, w_main, w_left, x, max_out_len):
    B, T, D = x.shape
    J = int(max_out_len)

    Dp = _round_up(max(D, 128), 128)       # lane-dense stores
    TK = min(512, _round_up(T, 128))       # time (contraction) tile
    Tp = _round_up(T, TK)
    TJ = min(256, _round_up(J, 8))         # output-row tile
    Jp = _round_up(J, TJ)
    nJ, nK = Jp // TJ, Tp // TK

    x_p = jnp.pad(x, ((0, 0), (0, Tp - T), (0, Dp - D)))

    BIG = 1 << 30                          # sentinel segment id for padded frames
    seg_i = jnp.pad(seg_cur.astype(jnp.int32), ((0, 0), (0, Tp - T)),
                    constant_values=BIG)
    wm_p = jnp.pad(w_main.astype(jnp.float32), ((0, 0), (0, Tp - T)))
    wl_p = jnp.pad(w_left.astype(jnp.float32), ((0, 0), (0, Tp - T)))
    # Fuse the three per-frame scalar tracks into one (B, 8, Tp) slab (one DMA).
    sc = jnp.zeros((B, 8, Tp), jnp.float32)
    sc = sc.at[:, 0, :].set(seg_i.astype(jnp.float32))   # exact: values < 2**31
    sc = sc.at[:, 1, :].set(wm_p)
    sc = sc.at[:, 2, :].set(wl_p)

    # Band bounds: seg_cur is monotone non-decreasing, so output rows
    # [j_lo, j_lo + TJ) only receive mass from frames with seg in
    # [j_lo - 1, j_lo + TJ - 1] — a contiguous window of frames.
    j_lo = jnp.arange(nJ, dtype=jnp.int32) * TJ
    t_lo = jax.vmap(lambda s: jnp.searchsorted(s, j_lo - 1, side='left'))(seg_i)
    t_hi = jax.vmap(
        lambda s: jnp.searchsorted(s, j_lo + TJ - 1, side='right'))(seg_i) - 1
    empty = t_lo > t_hi
    kmin_g = jnp.where(empty, nK, t_lo // TK).astype(jnp.int32)  # guard: never hit
    kmax_g = jnp.where(empty, -1, t_hi // TK).astype(jnp.int32)
    kmin_c = jnp.where(empty, 0, t_lo // TK).astype(jnp.int32)   # safe clamp range
    kmax_c = jnp.where(empty, 0, t_hi // TK).astype(jnp.int32)

    def _k_eff(k, kc, kxc, b, jt):
        # Off-band steps reuse the band-edge block -> no new DMA for skipped tiles.
        return jnp.minimum(jnp.maximum(k, kc[b, jt]), kxc[b, jt])

    sc_spec = pl.BlockSpec(
        (1, 8, TK),
        lambda b, jt, k, kg, kxg, kc, kxc: (b, 0, _k_eff(k, kc, kxc, b, jt)))
    x_spec = pl.BlockSpec(
        (1, TK, Dp),
        lambda b, jt, k, kg, kxg, kc, kxc: (b, _k_eff(k, kc, kxc, b, jt), 0))
    out_spec = pl.BlockSpec(
        (1, TJ, Dp), lambda b, jt, k, kg, kxg, kc, kxc: (b, jt, 0))

    out = pl.pallas_call(
        _cif_band_matmul_kernel,
        out_shape=jax.ShapeDtypeStruct((B, Jp, Dp), x.dtype),
        grid_spec=pltpu.PrefetchScalarGridSpec(
            num_scalar_prefetch=4,
            grid=(B, nJ, nK),
            in_specs=[sc_spec, x_spec],
            out_specs=out_spec,
            scratch_shapes=[pltpu.VMEM((TJ, Dp), jnp.float32)]),
        compiler_params=pltpu.CompilerParams(
            dimension_semantics=("parallel", "parallel", "arbitrary")),
    )(kmin_g, kmax_g, kmin_c, kmax_c, sc, x_p)
    return out[:, :J, :D]


# ---------------------------------------------------------------------------
# JAX glue: derive per-frame segment indices / split weights from prob.
# ---------------------------------------------------------------------------
def _cif_weights(prob, threshold):
    B, T = prob.shape
    cum = jnp.concatenate(
        [jnp.zeros((B, 1), prob.dtype), jnp.cumsum(prob, axis=1)], axis=1)  # (B, T+1)
    dis = jnp.floor(cum / threshold) * threshold
    dif = dis[:, 1:] - dis[:, :-1]                                          # (B, T)
    fire = dif != 0

    firei = fire.astype(jnp.int32)
    nf_incl = jnp.cumsum(firei, axis=1)     # fires in frames [0, t]
    seg_cur = nf_incl - firei               # fires strictly before frame t
    out_len = nf_incl[:, -1]

    # Non-firing frames feed their whole prob to the ongoing segment; firing
    # frames split into "fill to threshold" (current) and "leftover" (next).
    w_main = jnp.where(fire, dis[:, 1:] - cum[:, :-1], prob)
    w_left_raw = jnp.where(fire, cum[:, 1:] - dis[:, 1:], jnp.zeros_like(prob))
    # Weights only count if the target segment actually completes (fires).
    w_main = jnp.where(seg_cur < out_len[:, None], w_main, 0.0)
    w_left = jnp.where(seg_cur + 1 < out_len[:, None], w_left_raw, 0.0)
    # Reference quirk: when the very first frame fires, its leftover mass is ALSO
    # added to the first fired output (prev_t == t_1 == 1 in the reference loop).
    w_main = w_main.at[:, 0].add(jnp.where(fire[:, 0], w_left_raw[:, 0], 0.0))
    return seg_cur, w_main, w_left, out_len, fire


def cif_forward(x, x_len, prob, tgt_len=None, *, threshold=1.0, normalize=True,
                downsample=0.0, max_out_len=None):
    """JAX/Pallas equivalent of CIF.forward. Output is padded to a static length."""
    B, T, D = x.shape
    if max_out_len is None:
        max_out_len = T  # at most one fire per frame; pass a tighter bound if known

    mask = jnp.arange(T)[None, :] < x_len[:, None]
    prob = prob * mask.astype(prob.dtype)

    quantity_loss = 0.0
    if downsample > 0.0 and normalize:
        assert tgt_len is None
        tgt_len = x_len.astype(prob.dtype) / downsample
    if tgt_len is not None:
        tgt_len = tgt_len.astype(prob.dtype)
        quantity_loss = jnp.abs(prob.sum(1) - tgt_len).mean()
    if tgt_len is not None and normalize:
        psum = prob.sum(1)
        scale = tgt_len / jnp.where(psum > 0, psum, jnp.ones_like(psum))
        prob = jnp.where(mask, prob * scale[:, None], prob)

    seg_cur, w_main, w_left, out_len, fire = _cif_weights(prob, threshold)
    out = _cif_pallas(seg_cur, w_main, w_left, x, max_out_len)
    # TODO(synk): the reference's "t_1 > x_len[b]" skip branch is unreachable for
    # masked non-negative probabilities and is not modeled; fired indices are
    # returned as a boolean (B, T) mask instead of per-batch Python lists.
    return out, out_len, quantity_loss, fire


# ---------------------------------------------------------------------------
# References for checking.
# ---------------------------------------------------------------------------
def _dense_reference(seg_cur, w_main, w_left, x, J):
    """Dense JAX reference for the fire matmul (same weights, no tiling)."""
    j = jnp.arange(J, dtype=jnp.int32)[None, :, None]
    seg = seg_cur[:, None, :]
    W = (jnp.where(seg == j, w_main[:, None, :], 0.0)
         + jnp.where(seg + 1 == j, w_left[:, None, :], 0.0))
    return jnp.einsum('bjt,btd->bjd', W, x.astype(jnp.float32),
                      precision=jax.lax.Precision.HIGHEST)


def _reference_cif_numpy(x, x_len, prob, threshold=1.0, normalize=True,
                         downsample=0.0, tgt_len=None):
    """Faithful numpy port of the PyTorch loop."""
    x = np.array(x, dtype=np.float32)
    prob = np.array(prob, dtype=np.float32)
    x_len = np.array(x_len)
    B, T, D = x.shape
    mask = np.arange(T)[None, :] < x_len[:, None]
    prob = prob * mask.astype(prob.dtype)
    quantity_loss = 0.0
    if downsample > 0.0 and normalize:
        assert tgt_len is None
        tgt_len = x_len.astype(prob.dtype) / downsample
    if tgt_len is not None:
        quantity_loss = float(np.abs(prob.sum(1) - tgt_len).mean())
    if tgt_len is not None and normalize:
        for b in range(B):
            prob[b, : x_len[b]] *= tgt_len[b] / prob[b, : x_len[b]].sum()
    prob_1 = np.concatenate([np.zeros((B, 1), prob.dtype), prob], axis=1)
    cum_prob = np.cumsum(prob_1, axis=1)
    dis_prob = np.floor(cum_prob / threshold) * threshold
    dif_prob = dis_prob[:, 1:] - dis_prob[:, :-1]
    fire_b, fire_t = np.nonzero(dif_prob)
    prev_b, prev_t = 0, 1
    h_list = [[] for _ in range(B)]
    fired = [[] for _ in range(B)]
    for b, t in zip(fire_b, fire_t):
        t_1 = t + 1
        if b != prev_b:
            prev_b = b
            prev_t = 1
        if t_1 > x_len[b]:
            prev_t = 1
            continue
        remained = cum_prob[b, prev_t] - dis_prob[b, prev_t]
        h = remained * x[b, prev_t - 1]
        if prev_t + 1 < t_1:
            h = h + (prob_1[b, prev_t + 1:t_1, None] * x[b, prev_t:t_1 - 1]).sum(0)
        last_w = dis_prob[b, t_1] - cum_prob[b, t_1 - 1]
        h = h + last_w * x[b, t_1 - 1]
        h_list[b].append(h)
        fired[b].append(int(t))
        prev_t = t_1
    out_len = np.array([len(h_list[b]) for b in range(B)], dtype=np.int64)
    maxlen = int(out_len.max())
    out = np.zeros((B, maxlen, D), dtype=x.dtype)
    for b in range(B):
        for j, h in enumerate(h_list[b]):
            out[b, j] = h
    return out, out_len, quantity_loss, fired


if __name__ == "__main__":
    key = jax.random.PRNGKey(0)
    k1, k2, k3, k4 = jax.random.split(key, 4)

    # --- Test 1: end-to-end semantics vs the faithful numpy port of the torch loop.
    B, T, D = 2, 16, 32
    x = jax.random.normal(k1, (B, T, D), dtype=jnp.float32)
    prob = jax.random.uniform(k2, (B, T), dtype=jnp.float32, minval=0.05, maxval=0.95)
    x_len = jnp.array([16, 12], dtype=jnp.int32)

    out, out_len, qloss, fire = cif_forward(x, x_len, prob, threshold=1.0)
    out = jax.block_until_ready(out)

    ref_out, ref_len, ref_qloss, ref_fired = _reference_cif_numpy(
        np.asarray(x), np.asarray(x_len), np.asarray(prob), threshold=1.0)

    out_np = np.asarray(out)
    max_ref = ref_out.shape[1]
    assert np.array_equal(np.asarray(out_len, dtype=np.int64), ref_len), (out_len, ref_len)
    np.testing.assert_allclose(out_np[:, :max_ref], ref_out, rtol=2e-3, atol=2e-3)
    assert np.allclose(out_np[:, max_ref:], 0.0, atol=1e-5)
    fired_indices = [np.nonzero(np.asarray(fire)[b])[0].tolist() for b in range(B)]
    assert fired_indices == ref_fired, (fired_indices, ref_fired)

    # --- Test 2: larger shapes exercising J/T tiling, band skipping and D padding,
    #             checked against a dense JAX reference built from the same weights.
    B2, T2, D2 = 2, 600, 48
    x2 = jax.random.normal(k3, (B2, T2, D2), dtype=jnp.float32)
    prob2 = jax.random.uniform(k4, (B2, T2), dtype=jnp.float32, minval=0.05, maxval=0.95)
    x_len2 = jnp.array([600, 457], dtype=jnp.int32)
    mask2 = jnp.arange(T2)[None, :] < x_len2[:, None]
    seg2, wm2, wl2, out_len2, fire2 = _cif_weights(prob2 * mask2.astype(prob2.dtype), 1.0)
    out2 = jax.block_until_ready(_cif_pallas(seg2, wm2, wl2, x2, T2))
    ref2 = _dense_reference(seg2, wm2, wl2, x2, T2)
    np.testing.assert_allclose(np.asarray(out2), np.asarray(ref2), rtol=2e-3, atol=2e-3)

    print("KERNEL_OK")
</pallas_src>

<mosaic_0001>
module attributes {stable_mosaic.version = 11 : i64} {
  func.func @_cif_band_matmul_kernel(%arg0: i32, %arg1: i32, %arg2: i32, %arg3: memref<2x1xi32, #tpu.memory_space<smem>>, %arg4: memref<2x1xi32, #tpu.memory_space<smem>>, %arg5: memref<2x1xi32, #tpu.memory_space<smem>>, %arg6: memref<2x1xi32, #tpu.memory_space<smem>>, %arg7: memref<1x8x128xf32, #tpu.memory_space<vmem>>, %arg8: memref<1x128x128xf32, #tpu.memory_space<vmem>>, %arg9: memref<1x16x128xf32, #tpu.memory_space<vmem>>, %arg10: memref<16x128xf32, #tpu.memory_space<vmem>>) attributes {dimension_semantics = [#tpu.dimension_semantics<parallel>, #tpu.dimension_semantics<parallel>, #tpu.dimension_semantics<arbitrary>], iteration_bounds = array<i64: 2, 1, 1>, scalar_prefetch = 4 : i64, scratch_operands = 1 : i64, tpu.core_type = #tpu.core_type<tc>, window_params = [{transform_indices = @transform_0, window_bounds = array<i64: 1, 8, 128>}, {transform_indices = @transform_1, window_bounds = array<i64: 1, 128, 128>}, {transform_indices = @transform_2, window_bounds = array<i64: 1, 16, 128>}]} {
    %c0_i32 = arith.constant 0 : i32
    %0 = arith.cmpi eq, %arg2, %c0_i32 : i32
    %1 = arith.extui %0 : i1 to i32
    %c0_i32_0 = arith.constant 0 : i32
    %2 = arith.cmpi ne, %1, %c0_i32_0 : i32
    scf.if %2 {
      %cst = arith.constant 0.000000e+00 : f32
      %17 = vector.broadcast %cst : f32 to vector<16x128xf32>
      %c0 = arith.constant 0 : index
      %c0_4 = arith.constant 0 : index
      %18 = vector.load %arg10[%c0, %c0_4] : memref<16x128xf32, #tpu.memory_space<vmem>>, vector<16x128xf32>
      tpu.vector_store %arg10[%c0, %c0_4], %17 {strides = array<i32>} : memref<16x128xf32, #tpu.memory_space<vmem>>, vector<16x128xf32>,
    } else {
    }
    %3 = arith.index_cast %arg0 : i32 to index
    %4 = arith.index_cast %arg1 : i32 to index
    %5 = memref.load %arg3[%3, %4] : memref<2x1xi32, #tpu.memory_space<smem>>
    %6 = arith.cmpi sge, %arg2, %5 : i32
    %7 = arith.index_cast %arg0 : i32 to index
    %8 = arith.index_cast %arg1 : i32 to index
    %9 = memref.load %arg4[%7, %8] : memref<2x1xi32, #tpu.memory_space<smem>>
    %10 = arith.cmpi sle, %arg2, %9 : i32
    %11 = arith.andi %6, %10 : i1
    %12 = arith.extui %11 : i1 to i32
    %c0_i32_1 = arith.constant 0 : i32
    %13 = arith.cmpi ne, %12, %c0_i32_1 : i32
    scf.if %13 {
      %c0 = arith.constant 0 : index
      %c0_4 = arith.constant 0 : index
      %c0_5 = arith.constant 0 : index
      %17 = vector.load %arg7[%c0, %c0_4, %c0_5] : memref<1x8x128xf32, #tpu.memory_space<vmem>>, vector<1x8x128xf32>
      %18 = vector.shape_cast %17 : vector<1x8x128xf32> to vector<8x128xf32>
      %19 = vector.extract_strided_slice %18 {offsets = [0, 0], sizes = [1, 128], strides = [1, 1]} : vector<8x128xf32> to vector<1x128xf32>
      %20 = arith.fptosi %19 : vector<1x128xf32> to vector<1x128xi32>
      %21 = vector.extract_strided_slice %18 {offsets = [1, 0], sizes = [1, 128], strides = [1, 1]} : vector<8x128xf32> to vector<1x128xf32>
      %22 = vector.extract_strided_slice %18 {offsets = [2, 0], sizes = [1, 128], strides = [1, 1]} : vector<8x128xf32> to vector<1x128xf32>
      %23 = tpu.iota {dimensions = array<i32: 0>} : vector<16x128xi32>
      %c16_i32 = arith.constant 16 : i32
      %24 = arith.muli %arg1, %c16_i32 : i32
      %25 = vector.broadcast %24 : i32 to vector<16x128xi32>
      %26 = arith.addi %23, %25 : vector<16x128xi32>
      %27 = vector.broadcast %20 : vector<1x128xi32> to vector<16x128xi32>
      %28 = arith.cmpi eq, %27, %26 : vector<16x128xi32>
      %cst = arith.constant 0.000000e+00 : f32
      %29 = vector.shape_cast %21 : vector<1x128xf32> to vector<1x128xf32>
      %30 = vector.broadcast %29 : vector<1x128xf32> to vector<16x128xf32>
      %31 = vector.broadcast %cst : f32 to vector<16x128xf32>
      %32 = arith.select %28, %30, %31 : vector<16x128xi1>, vector<16x128xf32>
      %c1_i32 = arith.constant 1 : i32
      %33 = vector.broadcast %c1_i32 : i32 to vector<1x128xi32>
      %34 = arith.addi %20, %33 : vector<1x128xi32>
      %35 = vector.broadcast %34 : vector<1x128xi32> to vector<16x128xi32>
      %36 = arith.cmpi eq, %35, %26 : vector<16x128xi32>
      %cst_6 = arith.constant 0.000000e+00 : f32
      %37 = vector.shape_cast %22 : vector<1x128xf32> to vector<1x128xf32>
      %38 = vector.broadcast %37 : vector<1x128xf32> to vector<16x128xf32>
      %39 = vector.broadcast %cst_6 : f32 to vector<16x128xf32>
      %40 = arith.select %36, %38, %39 : vector<16x128xi1>, vector<16x128xf32>
      %41 = arith.addf %32, %40 : vector<16x128xf32>
      %c0_7 = arith.constant 0 : index
      %c0_8 = arith.constant 0 : index
      %42 = vector.load %arg10[%c0_7, %c0_8] : memref<16x128xf32, #tpu.memory_space<vmem>>, vector<16x128xf32>
      %c0_9 = arith.constant 0 : index
      %c0_10 = arith.constant 0 : index
      %c0_11 = arith.constant 0 : index
      %43 = vector.load %arg8[%c0_9, %c0_10, %c0_11] : memref<1x128x128xf32, #tpu.memory_space<vmem>>, vector<1x128x128xf32>
      %44 = vector.shape_cast %43 : vector<1x128x128xf32> to vector<128x128xf32>
      %cst_12 = arith.constant dense<0.000000e+00> : vector<16x128xf32>
      %45 = tpu.matmul %41, %44, %cst_12 {dimension_numbers = #tpu.dot_dimension_numbers<[1], [0], [0], [1], [0, 0, 1, 1], [], []>} : vector<16x128xf32>, vector<128x128xf32>, vector<16x128xf32> -> vector<16x128xf32>
      %46 = arith.addf %42, %45 : vector<16x128xf32>
      %c0_13 = arith.constant 0 : index
      %c0_14 = arith.constant 0 : index
      %47 = vector.load %arg10[%c0_13, %c0_14] : memref<16x128xf32, #tpu.memory_space<vmem>>, vector<16x128xf32>
      tpu.vector_store %arg10[%c0_13, %c0_14], %46 {strides = array<i32>} : memref<16x128xf32, #tpu.memory_space<vmem>>, vector<16x128xf32>,
    } else {
    }
    %c0_i32_2 = arith.constant 0 : i32
    %14 = arith.cmpi eq, %arg2, %c0_i32_2 : i32
    %15 = arith.extui %14 : i1 to i32
    %c0_i32_3 = arith.constant 0 : i32
    %16 = arith.cmpi ne, %15, %c0_i32_3 : i32
    scf.if %16 {
      %c0 = arith.constant 0 : index
      %c0_4 = arith.constant 0 : index
      %17 = vector.load %arg10[%c0, %c0_4] : memref<16x128xf32, #tpu.memory_space<vmem>>, vector<16x128xf32>
      %c0_5 = arith.constant 0 : index
      %c0_6 = arith.constant 0 : index
      %c0_7 = arith.constant 0 : index
      %18 = vector.load %arg9[%c0_5, %c0_6, %c0_7] : memref<1x16x128xf32, #tpu.memory_space<vmem>>, vector<1x16x128xf32>
      %19 = vector.shape_cast %18 : vector<1x16x128xf32> to vector<16x128xf32>
      %20 = vector.shape_cast %17 : vector<16x128xf32> to vector<1x16x128xf32>
      tpu.vector_store %arg9[%c0_5, %c0_6, %c0_7], %20 {strides = array<i32>} : memref<1x16x128xf32, #tpu.memory_space<vmem>>, vector<1x16x128xf32>,
    } else {
    }
    return
  }
  func.func @transform_0(%arg0: i32, %arg1: i32, %arg2: i32, %arg3: memref<2x1xi32, #tpu.memory_space<smem>>, %arg4: memref<2x1xi32, #tpu.memory_space<smem>>, %arg5: memref<2x1xi32, #tpu.memory_space<smem>>, %arg6: memref<2x1xi32, #tpu.memory_space<smem>>) -> (i32, i32, i32) {
    %0 = arith.index_cast %arg0 : i32 to index
    %1 = arith.index_cast %arg1 : i32 to index
    %2 = memref.load %arg5[%0, %1] : memref<2x1xi32, #tpu.memory_space<smem>>
    %3 = arith.maxsi %arg2, %2 : i32
    %4 = arith.index_cast %arg0 : i32 to index
    %5 = arith.index_cast %arg1 : i32 to index
    %6 = memref.load %arg6[%4, %5] : memref<2x1xi32, #tpu.memory_space<smem>>
    %7 = arith.minsi %3, %6 : i32
    %c0_i32 = arith.constant 0 : i32
    %c0_i32_0 = arith.constant 0 : i32
    return %arg0, %c0_i32, %7 : i32, i32, i32
  }
  func.func @transform_1(%arg0: i32, %arg1: i32, %arg2: i32, %arg3: memref<2x1xi32, #tpu.memory_space<smem>>, %arg4: memref<2x1xi32, #tpu.memory_space<smem>>, %arg5: memref<2x1xi32, #tpu.memory_space<smem>>, %arg6: memref<2x1xi32, #tpu.memory_space<smem>>) -> (i32, i32, i32) {
    %0 = arith.index_cast %arg0 : i32 to index
    %1 = arith.index_cast %arg1 : i32 to index
    %2 = memref.load %arg5[%0, %1] : memref<2x1xi32, #tpu.memory_space<smem>>
    %3 = arith.maxsi %arg2, %2 : i32
    %4 = arith.index_cast %arg0 : i32 to index
    %5 = arith.index_cast %arg1 : i32 to index
    %6 = memref.load %arg6[%4, %5] : memref<2x1xi32, #tpu.memory_space<smem>>
    %7 = arith.minsi %3, %6 : i32
    %c0_i32 = arith.constant 0 : i32
    %c0_i32_0 = arith.constant 0 : i32
    return %arg0, %7, %c0_i32 : i32, i32, i32
  }
  func.func @transform_2(%arg0: i32, %arg1: i32, %arg2: i32, %arg3: memref<2x1xi32, #tpu.memory_space<smem>>, %arg4: memref<2x1xi32, #tpu.memory_space<smem>>, %arg5: memref<2x1xi32, #tpu.memory_space<smem>>, %arg6: memref<2x1xi32, #tpu.memory_space<smem>>) -> (i32, i32, i32) {
    %c0_i32 = arith.constant 0 : i32
    %c0_i32_0 = arith.constant 0 : i32
    return %arg0, %arg1, %c0_i32 : i32, i32, i32
  }
}

</mosaic_0001>

<llo_original>
// kernel: tpu_custom_call.1
$region0: #{tpu_custom_call.1}
  #allocation0 [shape = 'u32[]', space=smem, size = 0x4, offset = 0x4, fixed_abs, tag = 'smem constant byte address 0x4 - core index']
  #allocation1 [shape = 'u32[144,128]{1,0:T(1,128)}', space=vmem, size = 0x12000, scoped, tag = 'internal scratch']
  #allocation2 [shape = 'f32[16,128]{1,0:T(8,128)}', space=vmem, size = 0x2000, scoped, tag = 'scratch operand']
  #allocation3 [shape = 's32[1]{0}', space=sflag, size = 0x4, scoped, tag = 'scoped memory for tpu_custom_call.1']
  #allocation4 [shape = 'u8[1024]{0}', space=smem, size = 0x400, scoped, tag = 'prefetched SMEM operand 0']
  #allocation5 [shape = 'u8[1024]{0}', space=smem, size = 0x400, scoped, tag = 'prefetched SMEM operand 1']
  #allocation6 [shape = 'u8[1024]{0}', space=smem, size = 0x400, scoped, tag = 'prefetched SMEM operand 2']
  #allocation7 [shape = 'u8[1024]{0}', space=smem, size = 0x400, scoped, tag = 'prefetched SMEM operand 3']
  %s0 = inlined_call_operand.vmem [shape: s32[2,1], index: 0, kind: input, shape index: {}]
  %s1 = inlined_call_operand.vmem [shape: s32[2,1], index: 1, kind: input, shape index: {}]
  %s2 = inlined_call_operand.vmem [shape: s32[2,1], index: 2, kind: input, shape index: {}]
  %s3 = inlined_call_operand.vmem [shape: s32[2,1], index: 3, kind: input, shape index: {}]
  %s4 = inlined_call_operand.vmem [shape: f32[2,8,128], index: 4, kind: input, shape index: {}]
  %s5 = inlined_call_operand.hbm [shape: f32[2,128,128], index: 5, kind: input, shape index: {}]
  %s6 = inlined_call_operand.hbm [shape: f32[2,16,128], index: 6, kind: output, shape index: {}]
  %s7 = sld [smem:[#allocation0]]
  $region57: #{tpu_custom_call.1} parent=0
    _
  %s9 = ssub.s32 1, %s7
  %s10 = scalar_select 0, %s9, %s7
  %s11 = sshll.u32 %s0, 4
  %s12 = int_to_ptr.vmem [resolvable:$true] %s11
  %14 = dma.vmem_to_smem %s12, 32, [#allocation4], [#allocation3]
  %s15 = sshll.u32 %s1, 4
  %s16 = int_to_ptr.vmem [resolvable:$true] %s15
  %18 = dma.vmem_to_smem %s16, 32, [#allocation5], [#allocation3]
  %s19 = sshll.u32 %s2, 4
  %s20 = int_to_ptr.vmem [resolvable:$true] %s19
  %22 = dma.vmem_to_smem %s20, 32, [#allocation6], [#allocation3]
  %s23 = sshll.u32 %s3, 4
  %s24 = int_to_ptr.vmem [resolvable:$true] %s23
  %26 = dma.vmem_to_smem %s24, 32, [#allocation7], [#allocation3]
  %27 = dma.done [#allocation3], 128
  %28 = sfence
  $region1: #{tpu_custom_call.1} parent=0
    #allocation8 [shape = 'u8[131072]{0}', space=vmem, size = 0x20000, scoped, tag = 'input window, operand 5']
    #allocation9 [shape = 's32[2]{0}', space=sflag, size = 0x8, scoped, tag = 'scoped memory for tpu_custom_call.1']
    #allocation10 [shape = 's32[2]{0}', space=sflag, size = 0x8, scoped, tag = 'scoped memory for tpu_custom_call.1']
    #allocation11 [shape = 'u8[16384]{0}', space=vmem, size = 0x4000, scoped, tag = 'output window, operand 0']
    %29 = vsyncpa [#allocation9], 0
    %s30 = scalar_lea.sflag [#allocation9], 1
    %31 = vsyncpa %s30, 0
    %32 = vsyncpa [#allocation10], 0
    %s33 = scalar_lea.sflag [#allocation10], 1
    %34 = vsyncpa %s33, 0
    loop: start=0, step=1, limit=4
    $region2: #{tpu_custom_call.1} parent=1 // loop_pre_header
      _
    $region3: #{tpu_custom_call.1} parent=1 // loop_header
      %s36 = sphi 0, %s40
      %p37 = scmp.ge.s32.totalorder %s36, 4
      %s43 = sphi 0, %s62
      %s44 = sphi 0, %s58
      %s45 = sphi 0, %s54
      %s46 = sphi 0, %s43
      %s47 = sphi 0, %s44
      %s48 = sphi 0, %s45
      %s49 = sphi 0, %s46
      %s50 = sphi 0, %s47
      %s51 = sphi 0, %s48
      %s93 = sphi 0, %s95
      %s96 = sphi 0, %s93
      %s97 = sphi 0, %s96
      %s113 = sphi 0, %s97
      %s147 = sphi 0, %s149
      %s150 = sphi 0, %s147
      %s151 = sphi 0, %s150
      %s167 = sphi 0, %s151
      %s175 = sphi 0, %s177
      %s178 = sphi 0, %s175
      %s179 = sphi 0, %s178
      %s195 = sphi 0, %s179
    $region4: #{tpu_custom_call.1} parent=1 // loop_header_branch
      %39 = sbr.rel (%p37) target = $region8
    $region5: #{tpu_custom_call.1} parent=1 // loop_body
      %s41 = ssub.s32 %s36, 1
      %s42 = ssub.s32 %s36, 2
      %s52 = sadd.s32 1, %s45
      %p53 = scmp.ge.s32.totalorder %s52, 1
      %s54 = scalar_select %p53, 0, %s52
      %s55 = sadd.s32 1, %s44
      %s56 = scalar_select %p53, %s55, %s44
      %p57 = scmp.ge.s32.totalorder %s56, 1
      %s58 = scalar_select %p57, 0, %s56
      %s59 = sadd.s32 1, %s43
      %s60 = scalar_select %p57, %s59, %s43
      %p61 = scmp.ge.s32.totalorder %s60, 2
      %s62 = scalar_select %p61, 0, %s60
      %s63 = sshra.s32 %s44, 7
      %s64 = sand.u32 %s44, 127
      %s65 = sadd.s32 %s63, %s43
      %s66 = smul.u32 %s65, 128
      %s67 = sshra.s32 %s44, 7
      %s68 = sand.u32 %s44, 127
      %s69 = sadd.s32 %s66, %s68
      %s70 = sld [smem:[#allocation6 + %s69]]
      %p71 = scmp.gt.s32.totalorder %s45, %s70
      %s72 = scalar_select %p71, %s45, %s70
      %s73 = sld [smem:[#allocation7 + %s69]]
      %p74 = scmp.lt.s32.totalorder %s72, %s73
      %s75 = scalar_select %p74, %s72, %s73
      %s76 = sshra.s32 %s58, 7
      %s77 = sand.u32 %s58, 127
      %s78 = sadd.s32 %s76, %s62
      %s79 = smul.u32 %s78, 128
      %s80 = sshra.s32 %s58, 7
      %s81 = sand.u32 %s58, 127
      %s82 = sadd.s32 %s79, %s81
      %s83 = sld [smem:[#allocation6 + %s82]]
      %p84 = scmp.gt.s32.totalorder %s54, %s83
      %s85 = scalar_select %p84, %s54, %s83
      %s86 = sld [smem:[#allocation7 + %s82]]
      %p87 = scmp.lt.s32.totalorder %s85, %s86
      %s88 = scalar_select %p87, %s85, %s86
      %s89 = ssub.s32 %s43, %s62
      %s90 = ssub.s32 %s75, %s88
      %s91 = sor.u32 %s89, %s90
      %p92 = scmp.eq.s32.totalorder %s91, 0
      %s94 = sadd.s32 %s93, 1
      %s95 = scalar_select %p92, %s93, %s94
      %p98 = pneg %p92
      %p99 = scmp.eq.s32.totalorder %s36, 1
      %p100 = por %p98, %p99
      %p101 = scmp.ne.s32.totalorder %s93, %s96
      %p102 = scmp.eq.s32.totalorder %s36, 0
      %p103 = por %p101, %p102
      %p104 = scmp.ne.s32.totalorder %s93, %s96
      %p105 = scmp.eq.s32.totalorder %s41, 1
      %p106 = por %p104, %p105
      %p107 = scmp.ne.s32.totalorder %s96, %s97
      %p108 = scmp.eq.s32.totalorder %s41, 0
      %p109 = por %p107, %p108
      %p110 = scmp.ne.s32.totalorder %s96, %s97
      %p111 = scmp.eq.s32.totalorder %s42, 1
      %p112 = por %p110, %p111
      %p114 = scmp.ne.s32.totalorder %s97, %s113
      %p115 = scmp.eq.s32.totalorder %s42, 0
      %p116 = por %p114, %p115
      %s117 = sshra.s32 %s44, 7
      %s118 = sand.u32 %s44, 127
      %s119 = sadd.s32 %s117, %s43
      %s120 = smul.u32 %s119, 128
      %s121 = sshra.s32 %s44, 7
      %s122 = sand.u32 %s44, 127
      %s123 = sadd.s32 %s120, %s122
      %s124 = sld [smem:[#allocation6 + %s123]]
      %p125 = scmp.gt.s32.totalorder %s45, %s124
      %s126 = scalar_select %p125, %s45, %s124
      %s127 = sld [smem:[#allocation7 + %s123]]
      %p128 = scmp.lt.s32.totalorder %s126, %s127
      %s129 = scalar_select %p128, %s126, %s127
      %s130 = sshra.s32 %s58, 7
      %s131 = sand.u32 %s58, 127
      %s132 = sadd.s32 %s130, %s62
      %s133 = smul.u32 %s132, 128
      %s134 = sshra.s32 %s58, 7
      %s135 = sand.u32 %s58, 127
      %s136 = sadd.s32 %s133, %s135
      %s137 = sld [smem:[#allocation6 + %s136]]
      %p138 = scmp.gt.s32.totalorder %s54, %s137
      %s139 = scalar_select %p138, %s54, %s137
      %s140 = sld [smem:[#allocation7 + %s136]]
      %p141 = scmp.lt.s32.totalorder %s139, %s140
      %s142 = scalar_select %p141, %s139, %s140
      %s143 = ssub.s32 %s43, %s62
      %s144 = ssub.s32 %s129, %s142
      %s145 = sor.u32 %s143, %s144
      %p146 = scmp.eq.s32.totalorder %s145, 0
      %s148 = sadd.s32 %s147, 1
      %s149 = scalar_select %p146, %s147, %s148
      %p152 = pneg %p146
      %p153 = scmp.eq.s32.totalorder %s36, 1
      %p154 = por %p152, %p153
      %p155 = scmp.ne.s32.totalorder %s147, %s150
      %p156 = scmp.eq.s32.totalorder %s36, 0
      %p157 = por %p155, %p156
      %p158 = scmp.ne.s32.totalorder %s147, %s150
      %p159 = scmp.eq.s32.totalorder %s41, 1
      %p160 = por %p158, %p159
      %p161 = scmp.ne.s32.totalorder %s150, %s151
      %p162 = scmp.eq.s32.totalorder %s41, 0
      %p163 = por %p161, %p162
      %p164 = scmp.ne.s32.totalorder %s150, %s151
      %p165 = scmp.eq.s32.totalorder %s42, 1
      %p166 = por %p164, %p165
      %p168 = scmp.ne.s32.totalorder %s151, %s167
      %p169 = scmp.eq.s32.totalorder %s42, 0
      %p170 = por %p168, %p169
      %s171 = ssub.s32 %s43, %s62
      %s172 = ssub.s32 %s44, %s58
      %s173 = sor.u32 %s171, %s172
      %p174 = scmp.eq.s32.totalorder %s173, 0
      %s176 = sadd.s32 %s175, 1
      %s177 = scalar_select %p174, %s175, %s176
      %p180 = pneg %p174
      %p181 = scmp.eq.s32.totalorder %s36, 1
      %p182 = por %p180, %p181
      %p183 = scmp.ne.s32.totalorder %s175, %s178
      %p184 = scmp.eq.s32.totalorder %s36, 0
      %p185 = por %p183, %p184
      %p186 = scmp.ne.s32.totalorder %s175, %s178
      %p187 = scmp.eq.s32.totalorder %s41, 1
      %p188 = por %p186, %p187
      %p189 = scmp.ne.s32.totalorder %s178, %s179
      %p190 = scmp.eq.s32.totalorder %s41, 0
      %p191 = por %p189, %p190
      %p192 = scmp.ne.s32.totalorder %s178, %s179
      %p193 = scmp.eq.s32.totalorder %s42, 1
      %p194 = por %p192, %p193
      %p196 = scmp.ne.s32.totalorder %s179, %s195
      %p197 = scmp.eq.s32.totalorder %s42, 0
      %p198 = por %p196, %p197
      %p199 = scmp.le.s32.totalorder 1, %s36
      %p200 = scmp.lt.s32.totalorder %s36, 3
      %p201 = pnand %p199, %p200
      %p202 = pneg %p201
      // Predicated region
      $region9: #{tpu_custom_call.1} parent=5 // pred_check
        _
      $region10: #{tpu_custom_call.1} parent=5 // pred_check_branch
        %204 = sbr.rel (%p201) target = $region12
      $region11: #{tpu_custom_call.1} parent=5 // pred_region
        %s205 = ssub.s32 %s36, 1
      $region12: #{tpu_custom_call.1} parent=5 // pred_fallthru
        _
      %p206 = scmp.lt.s32.totalorder %s36, 2
      // Predicated region
      $region13: #{tpu_custom_call.1} parent=5 // pred_check
        %p207 = pneg %p206
      $region14: #{tpu_custom_call.1} parent=5 // pred_check_branch
        %209 = sbr.rel (%p207) target = $region16
      $region15: #{tpu_custom_call.1} parent=5 // pred_region
        // Predicated region
        $region17: #{tpu_custom_call.1} parent=15 // pred_check
          %p210 = pneg %p103
        $region18: #{tpu_custom_call.1} parent=15 // pred_check_branch
          %212 = sbr.rel (%p210) target = $region20
        $region19: #{tpu_custom_call.1} parent=15 // pred_region
          %s213 = sshra.s32 %s44, 7
          %s214 = sand.u32 %s44, 127
          %s215 = sadd.s32 %s213, %s43
          %s216 = smul.u32 %s215, 128
          %s217 = sshra.s32 %s44, 7
          %s218 = sand.u32 %s44, 127
          %s219 = sadd.s32 %s216, %s218
          %s220 = sld [smem:[#allocation6 + %s219]]
          %p221 = scmp.gt.s32.totalorder %s45, %s220
          %s222 = scalar_select %p221, %s45, %s220
          %s223 = sld [smem:[#allocation7 + %s219]]
          %p224 = scmp.lt.s32.totalorder %s222, %s223
          %s225 = scalar_select %p224, %s222, %s223
          %p226 = scmp.lt.s32.totalorder %s43, 1
          %s227 = scalar_select %p226, %s43, 1
          %p228 = scmp.lt.s32.totalorder %s225, 0
          %s229 = scalar_select %p228, %s225, 0
          %s230 = sadd.s32 %s229, %s227
          %s231 = smul.addr %s230, 8
          %s232 = scalar_lea.vmem %s4, %s231
          %s233 = sshra.s32 %s44, 7
          %s234 = sand.u32 %s44, 127
          %s235 = sadd.s32 %s233, %s43
          %s236 = smul.u32 %s235, 128
          %s237 = sshra.s32 %s44, 7
          %s238 = sand.u32 %s44, 127
          %s239 = sadd.s32 %s236, %s238
          %s240 = sld [smem:[#allocation6 + %s239]]
          %p241 = scmp.gt.s32.totalorder %s45, %s240
          %s242 = scalar_select %p241, %s45, %s240
          %s243 = sld [smem:[#allocation7 + %s239]]
          %p244 = scmp.lt.s32.totalorder %s242, %s243
          %s245 = scalar_select %p244, %s242, %s243
        $region20: #{tpu_custom_call.1} parent=15 // pred_fallthru
          _
        // Predicated region
        $region21: #{tpu_custom_call.1} parent=15 // pred_check
          %p246 = pneg %p157
        $region22: #{tpu_custom_call.1} parent=15 // pred_check_branch
          %248 = sbr.rel (%p246) target = $region24
        $region23: #{tpu_custom_call.1} parent=15 // pred_region
          %s249 = sand.u32 %s147, 1
          %s250 = scalar_lea.sflag [#allocation9], %s249
          %s251 = sand.u32 %s147, 1
          %s252 = smul.addr %s251, 128
          %s253 = scalar_lea.vmem [#allocation8], %s252
          %s254 = sshra.s32 %s44, 7
          %s255 = sand.u32 %s44, 127
          %s256 = sadd.s32 %s254, %s43
          %s257 = smul.u32 %s256, 128
          %s258 = sshra.s32 %s44, 7
          %s259 = sand.u32 %s44, 127
          %s260 = sadd.s32 %s257, %s259
          %s261 = sld [smem:[#allocation6 + %s260]]
          %p262 = scmp.gt.s32.totalorder %s45, %s261
          %s263 = scalar_select %p262, %s45, %s261
          %s264 = sld [smem:[#allocation7 + %s260]]
          %p265 = scmp.lt.s32.totalorder %s263, %s264
          %s266 = scalar_select %p265, %s263, %s264
          %s267 = smul.u32 16, %s266
          %s269 = ssub.s32 2048, 2048
          %270 = vsyncadd %s250, %s269
          %s271 = smul.addr %s43, 16
          %s272 = sadd.s32 %s267, %s271
          %s273 = smul.addr %s272, 128
          %s274 = scalar_lea.hbm %s5, %s273
          %s275 = sshll.u32 %s253, 4
          %s276 = int_to_ptr.vmem [resolvable:$true] %s275
          %281 = dma.hbm_to_vmem [thread:$0]  %s274, 2048, %s276, %s250, 128, 128, 8
        $region24: #{tpu_custom_call.1} parent=15 // pred_fallthru
          _
      $region16: #{tpu_custom_call.1} parent=5 // pred_fallthru
        _
      %p282 = scmp.le.s32.totalorder 1, %s36
      %p283 = scmp.lt.s32.totalorder %s36, 3
      %p284 = pnand %p282, %p283
      %p285 = pneg %p284
      // Predicated region
      $region25: #{tpu_custom_call.1} parent=5 // pred_check
        _
      $region26: #{tpu_custom_call.1} parent=5 // pred_check_branch
        %287 = sbr.rel (%p284) target = $region28
      $region27: #{tpu_custom_call.1} parent=5 // pred_region
        %s288 = ssub.s32 %s36, 1
        %s289 = sand.u32 %s150, 1
        %s290 = scalar_lea.sflag [#allocation9], %s289
        %s291 = sand.u32 %s150, 1
        %s292 = smul.addr %s291, 128
        %s293 = scalar_lea.vmem [#allocation8], %s292
        // Predicated region
        $region29: #{tpu_custom_call.1} parent=27 // pred_check
          %p294 = pneg %p163
        $region30: #{tpu_custom_call.1} parent=27 // pred_check_branch
          %296 = sbr.rel (%p294) target = $region32
        $region31: #{tpu_custom_call.1} parent=27 // pred_region
          %297 = dma.done %s290, 2048
        $region32: #{tpu_custom_call.1} parent=27 // pred_fallthru
          _
        %s298 = sshra.s32 %s47, 7
        %s299 = sand.u32 %s47, 127
        %s300 = sadd.s32 %s298, %s46
        %s301 = smul.u32 %s300, 128
        %s302 = sshra.s32 %s47, 7
        %s303 = sand.u32 %s47, 127
        %s304 = sadd.s32 %s301, %s303
        %s305 = sld [smem:[#allocation6 + %s304]]
        %p306 = scmp.gt.s32.totalorder %s48, %s305
        %s307 = scalar_select %p306, %s48, %s305
        %s308 = sld [smem:[#allocation7 + %s304]]
        %p309 = scmp.lt.s32.totalorder %s307, %s308
        %s310 = scalar_select %p309, %s307, %s308
        %p311 = scmp.lt.s32.totalorder %s46, 1
        %s312 = scalar_select %p311, %s46, 1
        %p313 = scmp.lt.s32.totalorder %s310, 0
        %s314 = scalar_select %p313, %s310, 0
        %s315 = sadd.s32 %s314, %s312
        %s316 = smul.addr %s315, 8
        %s317 = scalar_lea.vmem %s4, %s316
        %p318 = pneg %p109
        %p319 = pneg %p106
        %s320 = sand.u32 %s150, 1
        %s321 = scalar_lea.sflag [#allocation9], %s320
        %s322 = sand.u32 %s150, 1
        %s323 = smul.addr %s322, 128
        %s324 = scalar_lea.vmem [#allocation8], %s323
        %p325 = pneg %p163
        %p326 = pneg %p160
        %p327 = pneg %p191
        %p328 = pneg %p188
        %s329 = sand.u32 %s178, 1
        %s330 = scalar_lea.sflag [#allocation10], %s329
        %s331 = sand.u32 %s178, 1
        %s332 = smul.addr %s331, 16
        %s333 = scalar_lea.vmem [#allocation11], %s332
        %s334 = sshra.s32 %s47, 7
        %s335 = sand.u32 %s47, 127
        %s336 = sadd.s32 %s334, %s46
        %s337 = smul.u32 %s336, 128
        %s338 = sshra.s32 %s47, 7
        %s339 = sand.u32 %s47, 127
        %s340 = sadd.s32 %s337, %s339
        %s341 = sld [smem:[#allocation6 + %s340]]
        %p342 = scmp.gt.s32.totalorder %s48, %s341
        %s343 = scalar_select %p342, %s48, %s341
        %s344 = sld [smem:[#allocation7 + %s340]]
        %p345 = scmp.lt.s32.totalorder %s343, %s344
        %s346 = scalar_select %p345, %s343, %s344
        %p347 = scmp.lt.s32.totalorder %s46, 1
        %s348 = scalar_select %p347, %s46, 1
        %p349 = scmp.lt.s32.totalorder %s346, 0
        %s350 = scalar_select %p349, %s346, 0
        %s351 = sadd.s32 %s350, %s348
        %s352 = smul.addr %s351, 8
        %s353 = scalar_lea.vmem %s4, %s352
        %s354 = sshra.s32 %s47, 7
        %s355 = sand.u32 %s47, 127
        %s356 = sadd.s32 %s354, %s46
        %s357 = smul.u32 %s356, 128
        %s358 = sshra.s32 %s47, 7
        %s359 = sand.u32 %s47, 127
        %s360 = sadd.s32 %s357, %s359
        %s361 = sld [smem:[#allocation6 + %s360]]
        %p362 = scmp.gt.s32.totalorder %s48, %s361
        %s363 = scalar_select %p362, %s48, %s361
        %s364 = sld [smem:[#allocation7 + %s360]]
        %p365 = scmp.lt.s32.totalorder %s363, %s364
        %s366 = scalar_select %p365, %s363, %s364
        %s367 = sshra.s32 %s47, 7
        %s368 = sand.u32 %s47, 127
        %s369 = sadd.s32 %s367, %s46
        %s370 = smul.u32 %s369, 128
        %s371 = sshra.s32 %s47, 7
        %s372 = sand.u32 %s47, 127
        %s373 = sadd.s32 %s370, %s372
        %s374 = sld [smem:[#allocation6 + %s373]]
        %p375 = scmp.gt.s32.totalorder %s48, %s374
        %s376 = scalar_select %p375, %s48, %s374
        %s377 = sld [smem:[#allocation7 + %s373]]
        %p378 = scmp.lt.s32.totalorder %s376, %s377
        %s379 = scalar_select %p378, %s376, %s377
        %s380 = smul.u32 16, %s379
        %s381 = smul.u32 2, %s47
        %p382 = scmp.eq.s32.totalorder %s48, 0
        // Predicated region
        $region33: #{tpu_custom_call.1} parent=27 // pred_check
          %p383 = pneg %p382
        $region34: #{tpu_custom_call.1} parent=27 // pred_check_branch
          %385 = sbr.rel (%p383) target = $region36
        $region35: #{tpu_custom_call.1} parent=27 // pred_region
          %386 = vst [vmem:[#allocation2] sm:$0xff] 0.0
          %387 = vst [vmem:[#allocation2 + $0x8] sm:$0xff] 0.0
        $region36: #{tpu_custom_call.1} parent=27 // pred_fallthru
          _
        %s388 = sshra.s32 %s47, 7
        %s389 = sand.u32 %s47, 127
        %s390 = sadd.s32 %s388, %s46
        %s391 = smul.u32 %s390, 128
        %s392 = sshra.s32 %s47, 7
        %s393 = sand.u32 %s47, 127
        %s394 = sadd.s32 %s391, %s393
        %s395 = sld [smem:[#allocation4 + %s394]]
        %p396 = scmp.ge.s32.totalorder %s48, %s395
        %s397 = sld [smem:[#allocation5 + %s394]]
        %p398 = scmp.le.s32.totalorder %s48, %s397
        %p399 = pnand %p396, %p398
        %p400 = pneg %p399
        // Predicated region
        $region37: #{tpu_custom_call.1} parent=27 // pred_check
          _
        $region38: #{tpu_custom_call.1} parent=27 // pred_check_branch
          %402 = sbr.rel (%p399) target = $region40
        $region39: #{tpu_custom_call.1} parent=27 // pred_region
          %v403 = vld [vmem:[%s353] sm:$0xff]
          %v404 = vcvt.f32.s32.to.zero.pseudo %v403
          %v405 = vlaneseq
          %v406 = vshrl.u32 %v405, 7
          %v407 = vadd.s32 %v406, 8
          %s408 = smul.u32 %s47, 16
          %v409 = vstv %s408
          %v410 = vadd.s32 %v406, %v409
          %v411 = vadd.s32 %v407, %v409
          %v412 = vlaneseq
          %v413 = vshrl.u32 %v412, 7
          %v414 = vsub.s32 0, %v413
          %v415 = vrot.slane %v404, %v414
          %vm416 = vcmp.eq.s32.totalorder %v415, %v410
          %vm417 = vcmp.eq.s32.totalorder %v415, %v411
          %v418 = vlaneseq
          %v419 = vshrl.u32 %v418, 7
          %v420 = vsub.s32 1, %v419
          %v421 = vrot.slane %v403, %v420
          %v422 = vsel %vm416, %v421, 0.0
          %v423 = vsel %vm417, %v421, 0.0
          %v424 = vadd.s32 %v404, 1
          %v425 = vlaneseq
          %v426 = vshrl.u32 %v425, 7
          %v427 = vsub.s32 0, %v426
          %v428 = vrot.slane %v424, %v427
          %vm429 = vcmp.eq.s32.totalorder %v428, %v410
          %vm430 = vcmp.eq.s32.totalorder %v428, %v411
          %v431 = vlaneseq
          %v432 = vshrl.u32 %v431, 7
          %v433 = vsub.s32 2, %v432
          %v434 = vrot.slane %v403, %v433
          %v435 = vsel %vm429, %v434, 0.0
          %v436 = vsel %vm430, %v434, 0.0
          %v437 = vadd.f32 %v422, %v435
          %v438 = vadd.f32 %v423, %v436
          %v439 = vld [vmem:[#allocation2] sm:$0xff]
          %v440 = vld [vmem:[#allocation2 + $0x8] sm:$0xff]
          %v441 = vld [vmem:[%s293] sm:$0xff]
          %v442 = vld [vmem:[%s293 + $0x8] sm:$0xff]
          %v443 = vld [vmem:[%s293 + $0x10] sm:$0xff]
          %v444 = vld [vmem:[%s293 + $0x18] sm:$0xff]
          %v445 = vld [vmem:[%s293 + $0x20] sm:$0xff]
          %v446 = vld [vmem:[%s293 + $0x28] sm:$0xff]
          %v447 = vld [vmem:[%s293 + $0x30] sm:$0xff]
          %v448 = vld [vmem:[%s293 + $0x38] sm:$0xff]
          %v449 = vld [vmem:[%s293 + $0x40] sm:$0xff]
          %v450 = vld [vmem:[%s293 + $0x48] sm:$0xff]
          %v451 = vld [vmem:[%s293 + $0x50] sm:$0xff]
          %v452 = vld [vmem:[%s293 + $0x58] sm:$0xff]
          %v453 = vld [vmem:[%s293 + $0x60] sm:$0xff]
          %v454 = vld [vmem:[%s293 + $0x68] sm:$0xff]
          %v455 = vld [vmem:[%s293 + $0x70] sm:$0xff]
          %v456 = vld [vmem:[%s293 + $0x78] sm:$0xff]
          %457 = vmatprep.subr.mxu0 0.0
          %458 = vmatpush1.msra.mxu0 %v456
          %459 = vmatprep.subr.mxu0 0.0
          %460 = vmatpush1.msra.mxu0 %v455
          %461 = vmatprep.subr.mxu0 0.0
          %462 = vmatpush1.msra.mxu0 %v454
          %463 = vmatprep.subr.mxu0 0.0
          %464 = vmatpush1.msra.mxu0 %v453
          %465 = vmatprep.subr.mxu0 0.0
          %466 = vmatpush1.msra.mxu0 %v452
          %467 = vmatprep.subr.mxu0 0.0
          %468 = vmatpush1.msra.mxu0 %v451
          %469 = vmatprep.subr.mxu0 0.0
          %470 = vmatpush1.msra.mxu0 %v450
          %471 = vmatprep.subr.mxu0 0.0
          %472 = vmatpush1.msra.mxu0 %v449
          %473 = vmatprep.subr.mxu0 0.0
          %474 = vmatpush1.msra.mxu0 %v448
          %475 = vmatprep.subr.mxu0 0.0
          %476 = vmatpush1.msra.mxu0 %v447
          %477 = vmatprep.subr.mxu0 0.0
          %478 = vmatpush1.msra.mxu0 %v446
          %479 = vmatprep.subr.mxu0 0.0
          %480 = vmatpush1.msra.mxu0 %v445
          %481 = vmatprep.subr.mxu0 0.0
          %482 = vmatpush1.msra.mxu0 %v444
          %483 = vmatprep.subr.mxu0 0.0
          %484 = vmatpush1.msra.mxu0 %v443
          %485 = vmatprep.subr.mxu0 0.0
          %486 = vmatpush1.msra.mxu0 %v442
          %487 = vmatprep.subr.mxu0 0.0
          %488 = vmatpush1.msra.mxu0 %v441
          %489 = vmatprep.subr.mxu0 0.0
          %490 = vmatpush2.msra.mxu0 0.0
          %491 = vmatprep.subr.mxu0 0.0
          %492 = vmatpush2.msra.mxu0 0.0
          %493 = vmatprep.subr.mxu0 0.0
          %494 = vmatpush2.msra.mxu0 0.0
          %495 = vmatprep.subr.mxu0 0.0
          %496 = vmatpush2.msra.mxu0 0.0
          %497 = vmatprep.subr.mxu0 0.0
          %498 = vmatpush2.msra.mxu0 0.0
          %499 = vmatprep.subr.mxu0 0.0
          %500 = vmatpush2.msra.mxu0 0.0
          %501 = vmatprep.subr.mxu0 0.0
          %502 = vmatpush2.msra.mxu0 0.0
          %503 = vmatprep.subr.mxu0 0.0
          %504 = vmatpush2.msra.mxu0 0.0
          %505 = vmatprep.subr.mxu0 0.0
          %506 = vmatpush2.msra.mxu0 0.0
          %507 = vmatprep.subr.mxu0 0.0
          %508 = vmatpush2.msra.mxu0 0.0
          %509 = vmatprep.subr.mxu0 0.0
          %510 = vmatpush2.msra.mxu0 0.0
          %511 = vmatprep.subr.mxu0 0.0
          %512 = vmatpush2.msra.mxu0 0.0
          %513 = vmatprep.subr.mxu0 0.0
          %514 = vmatpush2.msra.mxu0 0.0
          %515 = vmatprep.subr.mxu0 0.0
          %516 = vmatpush2.msra.mxu0 0.0
          %517 = vmatprep.subr.mxu0 0.0
          %518 = vmatpush2.msra.mxu0 0.0
          %519 = vmatprep.subr.mxu0 0.0
          %520 = vmatpush2.msra.mxu0 0.0
          %521 = vmatprep.mubr.f32.mxu0 0.0
          %522 = vmatmul.mubr.f32.gmra.mxu0 %v437
          %v523 = vpop.f32.mrf.mxu0
          %v524 = vadd.f32 0.0, %v523
          %v525 = vpop.f32.mrf.mxu0
          %526 = vmatprep.mubr.f32.mxu0 0.0
          %527 = vmatmul.mubr.f32.gmra.mxu0 %v438
          %v528 = vpop.f32.mrf.mxu0
          %v529 = vadd.f32 0.0, %v528
          %v530 = vpop.f32.mrf.mxu0
          %531 = vdwg.mxu0
          %v532 = vadd.f32 %v439, %v524
          %v533 = vadd.f32 %v440, %v529
          %534 = vst [vmem:[#allocation2] sm:$0xff] %v532
          %535 = vst [vmem:[#allocation2 + $0x8] sm:$0xff] %v533
        $region40: #{tpu_custom_call.1} parent=27 // pred_fallthru
          _
        // Predicated region
        $region41: #{tpu_custom_call.1} parent=27 // pred_check
          %p536 = pneg %p382
        $region42: #{tpu_custom_call.1} parent=27 // pred_check_branch
          %538 = sbr.rel (%p536) target = $region44
        $region43: #{tpu_custom_call.1} parent=27 // pred_region
          %v539 = vld [vmem:[#allocation2] sm:$0xff]
          %v540 = vld [vmem:[#allocation2 + $0x8] sm:$0xff]
          %541 = vst [vmem:[%s333] sm:$0xff] %v539
          %542 = vst [vmem:[%s333 + $0x8] sm:$0xff] %v540
        $region44: #{tpu_custom_call.1} parent=27 // pred_fallthru
          _
        %s543 = sand.u32 %s178, 1
        %s544 = scalar_lea.sflag [#allocation10], %s543
        %s545 = sand.u32 %s178, 1
        %s546 = smul.addr %s545, 16
        %s547 = scalar_lea.vmem [#allocation11], %s546
        // Predicated region
        $region45: #{tpu_custom_call.1} parent=27 // pred_check
          %p548 = pneg %p188
        $region46: #{tpu_custom_call.1} parent=27 // pred_check_branch
          %550 = sbr.rel (%p548) target = $region48
        $region47: #{tpu_custom_call.1} parent=27 // pred_region
          %s551 = smul.u32 2, %s47
          %s553 = ssub.s32 256, 256
          %554 = vsyncadd %s544, %s553
          %s555 = smul.addr %s46, 2
          %s556 = sadd.s32 %s551, %s555
          %s557 = smul.addr %s556, 128
          %s558 = scalar_lea.hbm %s6, %s557
          %s559 = sshll.u32 %s547, 4
          %s560 = int_to_ptr.vmem [resolvable:$true] %s559
          %565 = dma.vmem_to_hbm [thread:$0]  %s560, 256, %s558, %s544, 128, 128, 8
        $region48: #{tpu_custom_call.1} parent=27 // pred_fallthru
          _
      $region28: #{tpu_custom_call.1} parent=5 // pred_fallthru
        _
      %p566 = scmp.le.s32.totalorder 2, %s36
      // Predicated region
      $region49: #{tpu_custom_call.1} parent=5 // pred_check
        %p567 = pneg %p566
      $region50: #{tpu_custom_call.1} parent=5 // pred_check_branch
        %569 = sbr.rel (%p567) target = $region52
      $region51: #{tpu_custom_call.1} parent=5 // pred_region
        %s570 = ssub.s32 %s36, 2
        // Predicated region
        $region53: #{tpu_custom_call.1} parent=51 // pred_check
          %p571 = pneg %p194
        $region54: #{tpu_custom_call.1} parent=51 // pred_check_branch
          %573 = sbr.rel (%p571) target = $region56
        $region55: #{tpu_custom_call.1} parent=51 // pred_region
          %s574 = sand.u32 %s179, 1
          %s575 = scalar_lea.sflag [#allocation10], %s574
          %s576 = sand.u32 %s179, 1
          %s577 = smul.addr %s576, 16
          %s578 = scalar_lea.vmem [#allocation11], %s577
          %579 = dma.done %s575, 256
        $region56: #{tpu_custom_call.1} parent=51 // pred_fallthru
          _
      $region52: #{tpu_custom_call.1} parent=5 // pred_fallthru
        _
    $region6: #{tpu_custom_call.1} parent=1 // loop_footer
      %s40 = sadd.s32 1, %s36
    $region7: #{tpu_custom_call.1} parent=1 // loop_footer_branch
      %35 = sbr.rel target = $region3
    $region8: #{tpu_custom_call.1} parent=1 // loop_exit
      _
    %580 = vsyncpa [#allocation9], 1
    %s581 = scalar_lea.sflag [#allocation9], 1
    %582 = vsyncpa %s581, 1
    %583 = vsyncpa [#allocation10], 1
    %s584 = scalar_lea.sflag [#allocation10], 1
    %585 = vsyncpa %s584, 1

</llo_original>
